<compile_context>
chip_gen: v6e
topology: v6e:2x2x1
jax: 0.10.0
libtpu: 0.0.40
codegen_flags: <defaults>
</compile_context>

<pallas_src>
import jax
import jax.numpy as jnp
from jax.experimental import pallas as pl
from jax.experimental.pallas import tpu as pltpu


_LANE_CANDIDATES = (32768, 16384, 8192, 4096, 2048, 1024, 512, 256, 128)
_SUBLANE_PACK = 32            # covers f32 (8), bf16/f16 (16), int8/fp8 (32)
_TILE_TARGET_BYTES = 6 << 20  # ~6 MiB blocks: 4 double-buffered copies ~= 24 MiB
_VMEM_LIMIT_BYTES = 40 << 20  # explicit limit; safe on v5e/v6e (128 MiB) and v7x (64 MiB)


def _copy_kernel(x_ref, o_ref):
    # The abstract transform() contributes no compute: pure passthrough.
    o_ref[...] = x_ref[...]


def _round_up(x: int, m: int) -> int:
    return -(-x // m) * m


def _lane_dense_layout(total: int) -> tuple[int, int, int]:
    """Pick (rows, lane_width, padded_total) with the widest lane-dense last dim.

    Prefers the widest 128-multiple that divides `total` while keeping at least
    8 rows (full sublanes); if nothing divides, pad to a full (8,128)-vreg
    multiple in the wrapper (sliced back after the copy) rather than emitting a
    1-row / masked-store layout.
    """
    best_narrow_rows = None
    for w in _LANE_CANDIDATES:
        if total % w == 0:
            rows = total // w
            if rows >= 8:
                return rows, w, total
            if best_narrow_rows is None:
                best_narrow_rows = (rows, w, total)
    if best_narrow_rows is not None:
        # Tiny tensor: block equals full array dims, which is always legal.
        return best_narrow_rows
    padded = _round_up(total, 8 * 128)
    return padded // 1024, 1024, padded


def _pick_tile_rows(rows: int, lane_w: int, itemsize: int) -> int:
    """Row-tile targeting ~6 MiB blocks, aligned to 32 sublanes, >= 2 grid steps."""
    target = (_TILE_TARGET_BYTES // (lane_w * itemsize)) // _SUBLANE_PACK * _SUBLANE_PACK
    target = max(_SUBLANE_PACK, target)
    if rows <= 2 * _SUBLANE_PACK:
        # Tiny slab: a single block equal to the full array dims (always legal).
        return rows
    # Guarantee >= 2 grid steps so v7x's two TensorCores both get work; the
    # ragged last block is handled by the cdiv grid (Pallas masks it).
    half = _round_up(_round_up(rows, 2) // 2, _SUBLANE_PACK)
    return max(_SUBLANE_PACK, min(target, half))


def abstract_augment_forward(data: jax.Array, *, materialize_copy: bool = True) -> jax.Array:
    """forward(data) of _AbstractAugment.

    sample_params() over an empty parameter set is a no-op; transform() is
    abstract, so forward reduces to returning `data` unchanged.
    """
    # --- sample_params(): module has no parameters -> empty dict, no effect.
    _sampled_params = {}

    # --- transform(): abstract -> identity.  Cheapest option is no kernel at all.
    if not materialize_copy:
        return data

    orig_shape = data.shape
    total = int(data.size)
    itemsize = jnp.dtype(data.dtype).itemsize
    rows, lane_w, padded_total = _lane_dense_layout(total)

    flat = data.reshape(-1)
    if padded_total != total:
        flat = jnp.pad(flat, (0, padded_total - total))
    flat = flat.reshape(rows, lane_w)  # wrapper-side layout plumbing (free for contiguous arrays)

    tile_rows = _pick_tile_rows(rows, lane_w, itemsize)
    grid = (pl.cdiv(rows, tile_rows),)
    block = pl.BlockSpec((tile_rows, lane_w), lambda i: (i, 0))
    nbytes = total * itemsize

    out = pl.pallas_call(
        _copy_kernel,
        out_shape=jax.ShapeDtypeStruct((rows, lane_w), flat.dtype),
        grid=grid,
        in_specs=[block],
        out_specs=block,
        compiler_params=pltpu.CompilerParams(
            # 1D parallel grid: no-op on v5e/v6e (1 TC), shards copy steps
            # across the 2 TensorCores on v7x.
            dimension_semantics=("parallel",),
            vmem_limit_bytes=_VMEM_LIMIT_BYTES,
        ),
        cost_estimate=pl.CostEstimate(
            flops=0, transcendentals=0, bytes_accessed=2 * nbytes),
    )(flat)

    out = out.reshape(-1)
    if padded_total != total:
        out = out[:total]

    # TODO(synk): subclass-specific `transform` implementations (rotation,
    # noise, etc.) would go here; the abstract base defines none.
    return out.reshape(orig_shape)


if __name__ == "__main__":
    key = jax.random.PRNGKey(0)
    # Small NCHW input consistent with an image-augmentation module.
    x = jax.random.normal(key, (2, 4, 16, 16), dtype=jnp.float32)

    y = abstract_augment_forward(x)
    y = jax.block_until_ready(y)

    assert y.shape == x.shape and y.dtype == x.dtype
    assert bool(jnp.all(y == x))
    print("KERNEL_OK")
</pallas_src>

<mosaic_0001>
module attributes {stable_mosaic.version = 11 : i64} {
  func.func @_copy_kernel(%arg0: i32, %arg1: memref<8x256xf32, #tpu.memory_space<vmem>>, %arg2: memref<8x256xf32, #tpu.memory_space<vmem>>) attributes {dimension_semantics = [#tpu.dimension_semantics<parallel>], iteration_bounds = array<i64: 1>, scalar_prefetch = 0 : i64, scratch_operands = 0 : i64, tpu.core_type = #tpu.core_type<tc>, window_params = [{transform_indices = @transform_0, window_bounds = array<i64: 8, 256>}, {transform_indices = @transform_1, window_bounds = array<i64: 8, 256>}]} {
    %c0 = arith.constant 0 : index
    %c0_0 = arith.constant 0 : index
    %0 = vector.load %arg1[%c0, %c0_0] : memref<8x256xf32, #tpu.memory_space<vmem>>, vector<8x256xf32>
    %c0_1 = arith.constant 0 : index
    %c0_2 = arith.constant 0 : index
    %1 = vector.load %arg2[%c0_1, %c0_2] : memref<8x256xf32, #tpu.memory_space<vmem>>, vector<8x256xf32>
    tpu.vector_store %arg2[%c0_1, %c0_2], %0 {strides = array<i32>} : memref<8x256xf32, #tpu.memory_space<vmem>>, vector<8x256xf32>,
    return
  }
  func.func @transform_0(%arg0: i32) -> (i32, i32) {
    %c0_i32 = arith.constant 0 : i32
    %c0_i32_0 = arith.constant 0 : i32
    return %arg0, %c0_i32 : i32, i32
  }
  func.func @transform_1(%arg0: i32) -> (i32, i32) {
    %c0_i32 = arith.constant 0 : i32
    %c0_i32_0 = arith.constant 0 : i32
    return %arg0, %c0_i32 : i32, i32
  }
}

</mosaic_0001>

<llo_original>
// kernel: tpu_custom_call.1
$region0: #{tpu_custom_call.1}
  #allocation0 [shape = 'u32[]', space=smem, size = 0x4, offset = 0x4, fixed_abs, tag = 'smem constant byte address 0x4 - core index']
  #allocation1 [shape = 'u32[144,128]{1,0:T(1,128)}', space=vmem, size = 0x12000, scoped, tag = 'internal scratch']
  %s0 = inlined_call_operand.hbm [shape: f32[8,256], index: 0, kind: input, shape index: {}]
  %s1 = inlined_call_operand.hbm [shape: f32[8,256], index: 1, kind: output, shape index: {}]
  %s2 = sld [smem:[#allocation0]]
  $region18: #{tpu_custom_call.1} parent=0
    _
  %s4 = ssub.s32 1, %s2
  %s5 = scalar_select 0, %s4, %s2
  $region1: #{tpu_custom_call.1} parent=0
    #allocation2 [shape = 'u8[8192]{0}', space=vmem, size = 0x2000, scoped, tag = 'input window, operand 0, single buffered']
    #allocation3 [shape = 's32[1]{0}', space=sflag, size = 0x4, scoped, tag = 'scoped memory for tpu_custom_call.1']
    #allocation4 [shape = 's32[1]{0}', space=sflag, size = 0x4, scoped, tag = 'scoped memory for tpu_custom_call.1']
    #allocation5 [shape = 'u8[8192]{0}', space=vmem, size = 0x2000, scoped, tag = 'output window, operand 0, single buffered']
    %6 = vsyncpa [#allocation3], 0
    %7 = vsyncpa [#allocation4], 0
    // Predicated region
    $region2: #{tpu_custom_call.1} parent=1 // pred_check
      _
    $region3: #{tpu_custom_call.1} parent=1 // pred_check_branch
      %9 = sbr.rel (0) target = $region5
    $region4: #{tpu_custom_call.1} parent=1 // pred_region
      %s11 = ssub.s32 256, 256
      %12 = vsyncadd [#allocation3], %s11
      %s14 = sshll.u32 [#allocation2], 4
      %s15 = int_to_ptr.vmem [resolvable:$true] %s14
      %17 = dma.hbm_to_vmem [thread:$0]  %s0, 256, %s15, [#allocation3]
    $region5: #{tpu_custom_call.1} parent=1 // pred_fallthru
      _
    // Predicated region
    $region6: #{tpu_custom_call.1} parent=1 // pred_check
      _
    $region7: #{tpu_custom_call.1} parent=1 // pred_check_branch
      %19 = sbr.rel (0) target = $region9
    $region8: #{tpu_custom_call.1} parent=1 // pred_region
      %20 = dma.done [#allocation3], 256
    $region9: #{tpu_custom_call.1} parent=1 // pred_fallthru
      _
    %v21 = vld [vmem:[#allocation2] sm:$0xff]
    %v22 = vld [vmem:[#allocation2 + $0x8] sm:$0xff]
    %23 = vst [vmem:[#allocation5] sm:$0xff] %v21
    %24 = vst [vmem:[#allocation5 + $0x8] sm:$0xff] %v22
    // Predicated region
    $region10: #{tpu_custom_call.1} parent=1 // pred_check
      _
    $region11: #{tpu_custom_call.1} parent=1 // pred_check_branch
      %26 = sbr.rel (0) target = $region13
    $region12: #{tpu_custom_call.1} parent=1 // pred_region
      %s28 = ssub.s32 256, 256
      %29 = vsyncadd [#allocation4], %s28
      %s31 = sshll.u32 [#allocation5], 4
      %s32 = int_to_ptr.vmem [resolvable:$true] %s31
      %34 = dma.vmem_to_hbm [thread:$0]  %s32, 256, %s1, [#allocation4]
    $region13: #{tpu_custom_call.1} parent=1 // pred_fallthru
      _
    // Predicated region
    $region14: #{tpu_custom_call.1} parent=1 // pred_check
      _
    $region15: #{tpu_custom_call.1} parent=1 // pred_check_branch
      %36 = sbr.rel (0) target = $region17
    $region16: #{tpu_custom_call.1} parent=1 // pred_region
      %37 = dma.done [#allocation4], 256
    $region17: #{tpu_custom_call.1} parent=1 // pred_fallthru
      _
    %38 = vsyncpa [#allocation3], 1
    %39 = vsyncpa [#allocation4], 1

</llo_original>
